<compile_context>
chip_gen: v5e
topology: v5e:2x2
jax: 0.10.0
libtpu: 0.0.40
codegen_flags: <defaults>
</compile_context>

<pallas_src>
import functools

import jax
import jax.numpy as jnp
from jax.experimental import pallas as pl
from jax.experimental.pallas import tpu as pltpu

NUM_MLP = 3      # number of (shared-weight) residual blocks
LANES = 128      # TPU lane width


def mlp_kernel(x_ref, wh_ref, bh_ref, wb_ref, bb_ref, wt_ref, bt_ref, o_ref,
               *, num_mlp):
    bf16 = jnp.bfloat16
    x = x_ref[...]                                                    # (TB, G*C) bf16

    # head: packed Linear(G*C -> HP) + ReLU (block-diag Wh; padded lanes stay 0)
    h = jnp.dot(x, wh_ref[...], preferred_element_type=jnp.float32)   # (TB, HP) f32
    h = jnp.maximum(h + bh_ref[...], 0.0)

    # residual blocks (shared weights): h = h + relu(h @ Wb_bd + bb)
    wb = wb_ref[...]                                                  # (HP, HP) bf16, resident
    bb_b = jnp.broadcast_to(bb_ref[...], h.shape)                     # hoisted broadcast (f32)
    for _ in range(num_mlp):
        y = jnp.dot(h.astype(bf16), wb, preferred_element_type=jnp.float32) + bb_b
        h = h + jnp.maximum(y, 0.0)

    # tail: packed Linear(HP -> G) on the MXU (block-diag Wt), scalar bias from SMEM.
    o = jnp.dot(h.astype(bf16), wt_ref[...], preferred_element_type=jnp.float32)
    o_ref[...] = (o + bt_ref[0, 0]).astype(o_ref.dtype)               # (TB, G)


def mlp_forward(x, wh, bh, wb, bb, wt, bt, *, num_mlp=NUM_MLP, max_tile_bp=4096):
    """x: (B, C) f32.  Weights in PyTorch Linear layout pre-transposed to (in, out):
       wh (C, H), bh (H,), wb (H, H), bb (H,), wt (H, 1), bt (1,)."""
    B, C = x.shape
    H = wh.shape[1]
    f32, bf16 = jnp.float32, jnp.bfloat16

    # Pack G batch rows per lane-row (G = 128 // H when H <= 128; degrades to G=1).
    G = max(1, LANES // H)
    GH = G * H
    HP = pl.cdiv(GH, LANES) * LANES        # lane-padded hidden width (128 for H=32)
    CP = G * C                             # packed input feature width

    # Block-diagonal weights (built in f32, cast to bf16 for the MXU).  Zero padding
    # keeps padded lanes identically zero through ReLU / residual adds, and off-diagonal
    # zeros contribute exactly 0 to every dot product.
    wh_bd = jnp.zeros((CP, HP), f32)
    wb_bd = jnp.zeros((HP, HP), f32)
    wt_bd = jnp.zeros((HP, G), f32)
    for g in range(G):
        wh_bd = wh_bd.at[g * C:(g + 1) * C, g * H:(g + 1) * H].set(wh.astype(f32))
        wb_bd = wb_bd.at[g * H:(g + 1) * H, g * H:(g + 1) * H].set(wb.astype(f32))
        wt_bd = wt_bd.at[g * H:(g + 1) * H, g].set(wt.reshape(H).astype(f32))
    wh_bd = wh_bd.astype(bf16)
    wb_bd = wb_bd.astype(bf16)
    wt_bd = wt_bd.astype(bf16)
    bh_t = jnp.zeros((1, HP), f32).at[:, :GH].set(jnp.tile(bh.astype(f32), G)[None, :])
    bb_t = jnp.zeros((1, HP), f32).at[:, :GH].set(jnp.tile(bb.astype(f32), G)[None, :])
    bt_s = bt.reshape(1, 1).astype(f32)

    # Batch packing / tiling.  tile_bp counts *packed* rows (each = G original rows).
    n_packed_raw = pl.cdiv(B, G)
    tile_bp = min(max_tile_bp, pl.cdiv(n_packed_raw, 8) * 8)
    # When the batch is big enough, keep >= 2 grid steps so the "parallel" axis can
    # load-balance across v7x's two TensorCores instead of collapsing to one fat tile.
    min_grid = 2
    if n_packed_raw >= min_grid * 8:
        tile_bp = min(tile_bp, pl.cdiv(pl.cdiv(n_packed_raw, min_grid), 8) * 8)
    n_packed = pl.cdiv(n_packed_raw, tile_bp) * tile_bp
    b_rows = n_packed * G

    # Pad batch, cast to bf16 (halves x DMA bytes), free row-major packing reshape.
    xp = jnp.zeros((b_rows, C), bf16).at[:B].set(x.astype(bf16))
    xp = xp.reshape(n_packed, CP)          # row i holds original rows i*G .. i*G+G-1

    grid = (n_packed // tile_bp,)
    out = pl.pallas_call(
        functools.partial(mlp_kernel, num_mlp=num_mlp),
        out_shape=jax.ShapeDtypeStruct((n_packed, G), f32),
        grid=grid,
        in_specs=[
            pl.BlockSpec((tile_bp, CP), lambda i: (i, 0)),            # x: tiled over batch
            pl.BlockSpec((CP, HP), lambda i: (0, 0)),                 # Wh block-diag: resident
            pl.BlockSpec((1, HP), lambda i: (0, 0)),                  # bh tiled: resident
            pl.BlockSpec((HP, HP), lambda i: (0, 0)),                 # Wb block-diag: resident
            pl.BlockSpec((1, HP), lambda i: (0, 0)),                  # bb tiled: resident
            pl.BlockSpec((HP, G), lambda i: (0, 0)),                  # Wt block-diag: resident
            pl.BlockSpec(memory_space=pltpu.MemorySpace.SMEM),        # bt: scalar in SMEM
        ],
        out_specs=pl.BlockSpec((tile_bp, G), lambda i: (i, 0)),
        compiler_params=pltpu.CompilerParams(
            dimension_semantics=("parallel",),
            vmem_limit_bytes=48 * 1024 * 1024,
        ),
    )(xp, wh_bd, bh_t, wb_bd, bb_t, wt_bd, bt_s)

    # Unpack (n_packed, G) -> (B, 1); padded rows are sliced off.
    return out.reshape(b_rows, 1)[:B]


def mlp_reference_f32(x, wh, bh, wb, bb, wt, bt, *, num_mlp=NUM_MLP):
    h = jnp.maximum(x @ wh + bh, 0.0)
    for _ in range(num_mlp):
        h = h + jnp.maximum(h @ wb + bb, 0.0)
    return h @ wt + bt


def mlp_reference_bf16(x, wh, bh, wb, bb, wt, bt, *, num_mlp=NUM_MLP):
    """Same math as the kernel: bf16 matmul operands, f32 accumulate, f32 VPU ops."""
    bf16 = jnp.bfloat16
    xb = x.astype(bf16)
    h = jnp.dot(xb, wh.astype(bf16), preferred_element_type=jnp.float32) + bh
    h = jnp.maximum(h, 0.0)
    for _ in range(num_mlp):
        y = jnp.dot(h.astype(bf16), wb.astype(bf16),
                    preferred_element_type=jnp.float32) + bb
        h = h + jnp.maximum(y, 0.0)
    return jnp.dot(h.astype(bf16), wt.astype(bf16),
                   preferred_element_type=jnp.float32) + bt


if __name__ == "__main__":
    B, C, H = 8, 16, 32  # batch, input_channels, hidden_channels

    key = jax.random.PRNGKey(0)
    kx, k1, k2, k3, k4, k5, k6 = jax.random.split(key, 7)

    x = jax.random.normal(kx, (B, C), dtype=jnp.float32)

    # Deterministic parameter init (shapes match nn.Linear, pre-transposed to (in, out)).
    wh = jax.random.normal(k1, (C, H), dtype=jnp.float32) * 0.1
    bh = jax.random.normal(k2, (H,), dtype=jnp.float32) * 0.1
    wb = jax.random.normal(k3, (H, H), dtype=jnp.float32) * 0.1   # shared across all blocks
    bb = jax.random.normal(k4, (H,), dtype=jnp.float32) * 0.1
    wt = jax.random.normal(k5, (H, 1), dtype=jnp.float32) * 0.1
    bt = jax.random.normal(k6, (1,), dtype=jnp.float32) * 0.1

    out = mlp_forward(x, wh, bh, wb, bb, wt, bt)
    out = jax.block_until_ready(out)
    assert out.shape == (B, 1), out.shape

    # Tight check vs a reference doing the same bf16-operand / f32-accumulate matmuls.
    ref_bf16 = mlp_reference_bf16(x, wh, bh, wb, bb, wt, bt)
    assert jnp.allclose(out, ref_bf16, atol=1e-3, rtol=1e-3), "mismatch vs bf16-matmul reference"
    # Loose sanity check vs the pure-f32 reference (bf16 operand rounding).
    ref_f32 = mlp_reference_f32(x, wh, bh, wb, bb, wt, bt)
    assert jnp.allclose(out, ref_f32, atol=5e-2, rtol=5e-2), "mismatch vs f32 reference"

    print("KERNEL_OK")
</pallas_src>

<mosaic_0001>
module attributes {stable_mosaic.version = 11 : i64} {
  func.func @mlp_kernel(%arg0: i32, %arg1: memref<8x64xbf16, #tpu.memory_space<vmem>>, %arg2: memref<64x128xbf16, #tpu.memory_space<vmem>>, %arg3: memref<1x128xf32, #tpu.memory_space<vmem>>, %arg4: memref<128x128xbf16, #tpu.memory_space<vmem>>, %arg5: memref<1x128xf32, #tpu.memory_space<vmem>>, %arg6: memref<128x4xbf16, #tpu.memory_space<vmem>>, %arg7: memref<1x1xf32, #tpu.memory_space<smem>>, %arg8: memref<8x4xf32, #tpu.memory_space<vmem>>) attributes {dimension_semantics = [#tpu.dimension_semantics<parallel>], iteration_bounds = array<i64: 1>, scalar_prefetch = 0 : i64, scratch_operands = 0 : i64, tpu.core_type = #tpu.core_type<tc>, window_params = [{transform_indices = @transform_0, window_bounds = array<i64: 8, 64>}, {pipeline_mode = #tpu.pipeline_mode<synchronous>, transform_indices = @transform_1, window_bounds = array<i64: 64, 128>}, {pipeline_mode = #tpu.pipeline_mode<synchronous>, transform_indices = @transform_2, window_bounds = array<i64: 1, 128>}, {pipeline_mode = #tpu.pipeline_mode<synchronous>, transform_indices = @transform_3, window_bounds = array<i64: 128, 128>}, {pipeline_mode = #tpu.pipeline_mode<synchronous>, transform_indices = @transform_4, window_bounds = array<i64: 1, 128>}, {pipeline_mode = #tpu.pipeline_mode<synchronous>, transform_indices = @transform_5, window_bounds = array<i64: 128, 4>}, {transform_indices = @transform_6, window_bounds = array<i64: 1, 1>}, {transform_indices = @transform_7, window_bounds = array<i64: 8, 4>}]} {
    %c0 = arith.constant 0 : index
    %c0_0 = arith.constant 0 : index
    %0 = vector.load %arg1[%c0, %c0_0] : memref<8x64xbf16, #tpu.memory_space<vmem>>, vector<8x64xbf16>
    %c0_1 = arith.constant 0 : index
    %c0_2 = arith.constant 0 : index
    %1 = vector.load %arg2[%c0_1, %c0_2] : memref<64x128xbf16, #tpu.memory_space<vmem>>, vector<64x128xbf16>
    %cst = arith.constant dense<0.000000e+00> : vector<8x128xf32>
    %2 = tpu.matmul %0, %1, %cst {dimension_numbers = #tpu.dot_dimension_numbers<[1], [0], [0], [1], [0, 0, 1, 1], [], []>} : vector<8x64xbf16>, vector<64x128xbf16>, vector<8x128xf32> -> vector<8x128xf32>
    %c0_3 = arith.constant 0 : index
    %c0_4 = arith.constant 0 : index
    %3 = vector.load %arg3[%c0_3, %c0_4] : memref<1x128xf32, #tpu.memory_space<vmem>>, vector<1x128xf32>
    %4 = vector.broadcast %3 : vector<1x128xf32> to vector<8x128xf32>
    %5 = arith.addf %2, %4 : vector<8x128xf32>
    %cst_5 = arith.constant 0.000000e+00 : f32
    %6 = vector.broadcast %cst_5 : f32 to vector<8x128xf32>
    %7 = arith.maximumf %5, %6 : vector<8x128xf32>
    %c0_6 = arith.constant 0 : index
    %c0_7 = arith.constant 0 : index
    %8 = vector.load %arg4[%c0_6, %c0_7] : memref<128x128xbf16, #tpu.memory_space<vmem>>, vector<128x128xbf16>
    %c0_8 = arith.constant 0 : index
    %c0_9 = arith.constant 0 : index
    %9 = vector.load %arg5[%c0_8, %c0_9] : memref<1x128xf32, #tpu.memory_space<vmem>>, vector<1x128xf32>
    %10 = vector.shape_cast %9 : vector<1x128xf32> to vector<1x128xf32>
    %11 = vector.broadcast %10 : vector<1x128xf32> to vector<8x128xf32>
    %12 = arith.truncf %7 : vector<8x128xf32> to vector<8x128xbf16>
    %cst_10 = arith.constant dense<0.000000e+00> : vector<8x128xf32>
    %13 = tpu.matmul %12, %8, %cst_10 {dimension_numbers = #tpu.dot_dimension_numbers<[1], [0], [0], [1], [0, 0, 1, 1], [], []>} : vector<8x128xbf16>, vector<128x128xbf16>, vector<8x128xf32> -> vector<8x128xf32>
    %14 = arith.addf %13, %11 : vector<8x128xf32>
    %cst_11 = arith.constant 0.000000e+00 : f32
    %15 = vector.broadcast %cst_11 : f32 to vector<8x128xf32>
    %16 = arith.maximumf %14, %15 : vector<8x128xf32>
    %17 = arith.addf %7, %16 : vector<8x128xf32>
    %18 = arith.truncf %17 : vector<8x128xf32> to vector<8x128xbf16>
    %cst_12 = arith.constant dense<0.000000e+00> : vector<8x128xf32>
    %19 = tpu.matmul %18, %8, %cst_12 {dimension_numbers = #tpu.dot_dimension_numbers<[1], [0], [0], [1], [0, 0, 1, 1], [], []>} : vector<8x128xbf16>, vector<128x128xbf16>, vector<8x128xf32> -> vector<8x128xf32>
    %20 = arith.addf %19, %11 : vector<8x128xf32>
    %cst_13 = arith.constant 0.000000e+00 : f32
    %21 = vector.broadcast %cst_13 : f32 to vector<8x128xf32>
    %22 = arith.maximumf %20, %21 : vector<8x128xf32>
    %23 = arith.addf %17, %22 : vector<8x128xf32>
    %24 = arith.truncf %23 : vector<8x128xf32> to vector<8x128xbf16>
    %cst_14 = arith.constant dense<0.000000e+00> : vector<8x128xf32>
    %25 = tpu.matmul %24, %8, %cst_14 {dimension_numbers = #tpu.dot_dimension_numbers<[1], [0], [0], [1], [0, 0, 1, 1], [], []>} : vector<8x128xbf16>, vector<128x128xbf16>, vector<8x128xf32> -> vector<8x128xf32>
    %26 = arith.addf %25, %11 : vector<8x128xf32>
    %cst_15 = arith.constant 0.000000e+00 : f32
    %27 = vector.broadcast %cst_15 : f32 to vector<8x128xf32>
    %28 = arith.maximumf %26, %27 : vector<8x128xf32>
    %29 = arith.addf %23, %28 : vector<8x128xf32>
    %30 = arith.truncf %29 : vector<8x128xf32> to vector<8x128xbf16>
    %c0_16 = arith.constant 0 : index
    %c0_17 = arith.constant 0 : index
    %31 = vector.load %arg6[%c0_16, %c0_17] : memref<128x4xbf16, #tpu.memory_space<vmem>>, vector<128x4xbf16>
    %cst_18 = arith.constant dense<0.000000e+00> : vector<8x4xf32>
    %32 = tpu.matmul %30, %31, %cst_18 {dimension_numbers = #tpu.dot_dimension_numbers<[1], [0], [0], [1], [0, 0, 1, 1], [], []>} : vector<8x128xbf16>, vector<128x4xbf16>, vector<8x4xf32> -> vector<8x4xf32>
    %c0_19 = arith.constant 0 : index
    %c0_20 = arith.constant 0 : index
    %33 = memref.load %arg7[%c0_19, %c0_20] : memref<1x1xf32, #tpu.memory_space<smem>>
    %34 = vector.broadcast %33 : f32 to vector<8x4xf32>
    %35 = arith.addf %32, %34 : vector<8x4xf32>
    %c0_21 = arith.constant 0 : index
    %c0_22 = arith.constant 0 : index
    %36 = vector.load %arg8[%c0_21, %c0_22] : memref<8x4xf32, #tpu.memory_space<vmem>>, vector<8x4xf32>
    tpu.vector_store %arg8[%c0_21, %c0_22], %35 {strides = array<i32>} : memref<8x4xf32, #tpu.memory_space<vmem>>, vector<8x4xf32>,
    return
  }
  func.func @transform_0(%arg0: i32) -> (i32, i32) {
    %c0_i32 = arith.constant 0 : i32
    %c0_i32_0 = arith.constant 0 : i32
    return %arg0, %c0_i32 : i32, i32
  }
  func.func @transform_1(%arg0: i32) -> (i32, i32) {
    %c0_i32 = arith.constant 0 : i32
    %c0_i32_0 = arith.constant 0 : i32
    %c0_i32_1 = arith.constant 0 : i32
    return %c0_i32, %c0_i32_0 : i32, i32
  }
  func.func @transform_2(%arg0: i32) -> (i32, i32) {
    %c0_i32 = arith.constant 0 : i32
    %c0_i32_0 = arith.constant 0 : i32
    %c0_i32_1 = arith.constant 0 : i32
    return %c0_i32, %c0_i32_0 : i32, i32
  }
  func.func @transform_3(%arg0: i32) -> (i32, i32) {
    %c0_i32 = arith.constant 0 : i32
    %c0_i32_0 = arith.constant 0 : i32
    %c0_i32_1 = arith.constant 0 : i32
    return %c0_i32, %c0_i32_0 : i32, i32
  }
  func.func @transform_4(%arg0: i32) -> (i32, i32) {
    %c0_i32 = arith.constant 0 : i32
    %c0_i32_0 = arith.constant 0 : i32
    %c0_i32_1 = arith.constant 0 : i32
    return %c0_i32, %c0_i32_0 : i32, i32
  }
  func.func @transform_5(%arg0: i32) -> (i32, i32) {
    %c0_i32 = arith.constant 0 : i32
    %c0_i32_0 = arith.constant 0 : i32
    %c0_i32_1 = arith.constant 0 : i32
    return %c0_i32, %c0_i32_0 : i32, i32
  }
  func.func @transform_6(%arg0: i32) -> (i32, i32) {
    %c0_i32 = arith.constant 0 : i32
    %c0_i32_0 = arith.constant 0 : i32
    %c0_i32_1 = arith.constant 0 : i32
    return %c0_i32, %c0_i32_0 : i32, i32
  }
  func.func @transform_7(%arg0: i32) -> (i32, i32) {
    %c0_i32 = arith.constant 0 : i32
    %c0_i32_0 = arith.constant 0 : i32
    return %arg0, %c0_i32 : i32, i32
  }
}

</mosaic_0001>

<llo_original>
// kernel: tpu_custom_call.1
$region0: #{tpu_custom_call.1}
  #allocation0 [shape = 'u32[]', space=smem, size = 0x4, offset = 0x4, fixed_abs, tag = 'smem constant byte address 0x4 - core index']
  #allocation1 [shape = 'u32[72,128]{1,0:T(1,128)}', space=vmem, size = 0x9000, scoped, tag = 'internal scratch']
  #allocation2 [shape = 'f32[1,1]{1,0:T(1,128)S(6)}', space=smem, size = 0x200, scoped, tag = 'scoped memory for tpu_custom_call.1']
  %s0 = inlined_call_operand.hbm [shape: bf16[8,64], index: 0, kind: input, shape index: {}]
  %s1 = inlined_call_operand.hbm [shape: bf16[64,128], index: 1, kind: input, shape index: {}]
  %s2 = inlined_call_operand.vmem [shape: f32[1,128], index: 2, kind: input, shape index: {}]
  %s3 = inlined_call_operand.vmem [shape: bf16[128,128], index: 3, kind: input, shape index: {}]
  %s4 = inlined_call_operand.vmem [shape: f32[1,128], index: 4, kind: input, shape index: {}]
  %s5 = inlined_call_operand.vmem [shape: bf16[128,4], index: 5, kind: input, shape index: {}]
  %s6 = inlined_call_operand.<no memory space> [shape: f32[1,1], index: 6, kind: input, shape index: {}]
  %s7 = inlined_call_operand.vmem [shape: f32[8,4], index: 7, kind: output, shape index: {}]
  %s8 = sld [smem:[#allocation0]]
  $region46: #{tpu_custom_call.1} parent=0
    _
  %s10 = ssub.s32 1, %s8
  %s11 = scalar_select 0, %s10, %s8
  %12 = sst [smem:[#allocation2]] %s6
  $region1: #{tpu_custom_call.1} parent=0
    #allocation3 [shape = 'u8[2048]{0}', space=vmem, size = 0x800, scoped, tag = 'input window, operand 0, single buffered']
    #allocation4 [shape = 's32[1]{0}', space=sflag, size = 0x4, scoped, tag = 'scoped memory for tpu_custom_call.1']
    #allocation5 [shape = 'u8[16384]{0}', space=vmem, size = 0x4000, scoped, tag = 'input window, operand 1, single buffered']
    #allocation6 [shape = 's32[1]{0}', space=sflag, size = 0x4, scoped, tag = 'scoped memory for tpu_custom_call.1']
    %13 = vsyncpa [#allocation4], 0
    %14 = vsyncpa [#allocation6], 0
    // Predicated region
    $region2: #{tpu_custom_call.1} parent=1 // pred_check
      _
    $region3: #{tpu_custom_call.1} parent=1 // pred_check_branch
      %16 = sbr.rel (0) target = $region5
    $region4: #{tpu_custom_call.1} parent=1 // pred_region
      %18 = vsyncadd [#allocation4], 0
      %s20 = sshll.u32 %s0, 4
      %s21 = int_to_ptr.hbm [resolvable:$true] %s20
      %s22 = sshll.u32 [#allocation3], 4
      %s23 = int_to_ptr.vmem [resolvable:$true] %s22
      %25 = dma.hbm_to_vmem [thread:$0]  %s21, 64, %s23, [#allocation4]
    $region5: #{tpu_custom_call.1} parent=1 // pred_fallthru
      _
    // Predicated region
    $region6: #{tpu_custom_call.1} parent=1 // pred_check
      _
    $region7: #{tpu_custom_call.1} parent=1 // pred_check_branch
      %27 = sbr.rel (0) target = $region9
    $region8: #{tpu_custom_call.1} parent=1 // pred_region
      %29 = vsyncadd [#allocation6], 0
      %s30 = sshll.u32 %s1, 4
      %s31 = int_to_ptr.hbm [resolvable:$true] %s30
      %s32 = sshll.u32 [#allocation5], 4
      %s33 = int_to_ptr.vmem [resolvable:$true] %s32
      %38 = dma.hbm_to_vmem [thread:$0]  %s31, 512, %s33, [#allocation6], 64, 64, 4
    $region9: #{tpu_custom_call.1} parent=1 // pred_fallthru
      _
    // Predicated region
    $region10: #{tpu_custom_call.1} parent=1 // pred_check
      _
    $region11: #{tpu_custom_call.1} parent=1 // pred_check_branch
      %40 = sbr.rel (0) target = $region13
    $region12: #{tpu_custom_call.1} parent=1 // pred_region
      _
    $region13: #{tpu_custom_call.1} parent=1 // pred_fallthru
      _
    // Predicated region
    $region14: #{tpu_custom_call.1} parent=1 // pred_check
      _
    $region15: #{tpu_custom_call.1} parent=1 // pred_check_branch
      %42 = sbr.rel (0) target = $region17
    $region16: #{tpu_custom_call.1} parent=1 // pred_region
      _
    $region17: #{tpu_custom_call.1} parent=1 // pred_fallthru
      _
    // Predicated region
    $region18: #{tpu_custom_call.1} parent=1 // pred_check
      _
    $region19: #{tpu_custom_call.1} parent=1 // pred_check_branch
      %44 = sbr.rel (0) target = $region21
    $region20: #{tpu_custom_call.1} parent=1 // pred_region
      _
    $region21: #{tpu_custom_call.1} parent=1 // pred_fallthru
      _
    // Predicated region
    $region22: #{tpu_custom_call.1} parent=1 // pred_check
      _
    $region23: #{tpu_custom_call.1} parent=1 // pred_check_branch
      %46 = sbr.rel (0) target = $region25
    $region24: #{tpu_custom_call.1} parent=1 // pred_region
      _
    $region25: #{tpu_custom_call.1} parent=1 // pred_fallthru
      _
    // Predicated region
    $region26: #{tpu_custom_call.1} parent=1 // pred_check
      _
    $region27: #{tpu_custom_call.1} parent=1 // pred_check_branch
      %48 = sbr.rel (0) target = $region29
    $region28: #{tpu_custom_call.1} parent=1 // pred_region
      _
    $region29: #{tpu_custom_call.1} parent=1 // pred_fallthru
      _
    // Predicated region
    $region30: #{tpu_custom_call.1} parent=1 // pred_check
      _
    $region31: #{tpu_custom_call.1} parent=1 // pred_check_branch
      %50 = sbr.rel (0) target = $region33
    $region32: #{tpu_custom_call.1} parent=1 // pred_region
      %52 = dma.done [#allocation4], 64
    $region33: #{tpu_custom_call.1} parent=1 // pred_fallthru
      _
    // Predicated region
    $region34: #{tpu_custom_call.1} parent=1 // pred_check
      _
    $region35: #{tpu_custom_call.1} parent=1 // pred_check_branch
      %54 = sbr.rel (0) target = $region37
    $region36: #{tpu_custom_call.1} parent=1 // pred_region
      %56 = dma.done [#allocation6], 512
    $region37: #{tpu_custom_call.1} parent=1 // pred_fallthru
      _
    %v58 = vld [vmem:[#allocation3] sm:$0xf]
    %v59 = vld [vmem:[#allocation5] sm:$0xf]
    %v60 = vld [vmem:[#allocation5 + $0x4] sm:$0xf]
    %v61 = vld [vmem:[#allocation5 + $0x8] sm:$0xf]
    %v62 = vld [vmem:[#allocation5 + $0xc] sm:$0xf]
    %v63 = vld [vmem:[#allocation5 + $0x10] sm:$0xf]
    %v64 = vld [vmem:[#allocation5 + $0x14] sm:$0xf]
    %v65 = vld [vmem:[#allocation5 + $0x18] sm:$0xf]
    %v66 = vld [vmem:[#allocation5 + $0x1c] sm:$0xf]
    %v67 = vld [vmem:[%s2] sm:$0x1]
    %v69 = vperm.slane %v67, 0
    %v79 = vunpack.c.l.b16 %v59
    %v80 = vunpack.c.l.b16 %v60
    %v81 = vunpack.c.l.b16 %v61
    %v82 = vunpack.c.l.b16 %v62
    %v83 = vunpack.c.l.b16 %v63
    %v84 = vunpack.c.l.b16 %v64
    %v85 = vunpack.c.l.b16 %v65
    %v86 = vunpack.c.l.b16 %v66
    %v87 = vpack.c.b16 %v80, %v79
    %v88 = vpack.c.b16 %v82, %v81
    %v89 = vpack.c.b16 %v84, %v83
    %v90 = vpack.c.b16 %v86, %v85
    %vm95 = vcmask 523264
    %v97 = vsel %vm95, %v58, 0
    %99 = vmatpush.bf16.msra.mxu0 0
    %100 = vmatpush.bf16.msra.mxu0 0
    %101 = vmatpush.bf16.msra.mxu0 0
    %102 = vmatpush.bf16.msra.mxu0 0
    %103 = vmatpush.bf16.msra.mxu0 %v90
    %104 = vmatpush.bf16.msra.mxu0 %v89
    %105 = vmatpush.bf16.msra.mxu0 %v88
    %106 = vmatpush.bf16.msra.mxu0 %v87
    %107 = vmatmul.bf16.gmra.mxu0 %v97
    %v108 = vpop.f32.mrf.mxu0
    %v109 = vadd.f32 %v69, %v108
    %v110 = vpop.f32.mrf.mxu0
    %111 = vdwg.mxu0
    %v112 = vmax.f32 %v109, 0.0
    %v113 = vld [vmem:[%s3] sm:$0xf]
    %v114 = vld [vmem:[%s3 + $0x4] sm:$0xf]
    %v115 = vld [vmem:[%s3 + $0x8] sm:$0xf]
    %v116 = vld [vmem:[%s3 + $0xc] sm:$0xf]
    %v117 = vld [vmem:[%s3 + $0x10] sm:$0xf]
    %v118 = vld [vmem:[%s3 + $0x14] sm:$0xf]
    %v119 = vld [vmem:[%s3 + $0x18] sm:$0xf]
    %v120 = vld [vmem:[%s3 + $0x1c] sm:$0xf]
    %v121 = vld [vmem:[%s3 + $0x20] sm:$0xf]
    %v122 = vld [vmem:[%s3 + $0x24] sm:$0xf]
    %v123 = vld [vmem:[%s3 + $0x28] sm:$0xf]
    %v124 = vld [vmem:[%s3 + $0x2c] sm:$0xf]
    %v125 = vld [vmem:[%s3 + $0x30] sm:$0xf]
    %v126 = vld [vmem:[%s3 + $0x34] sm:$0xf]
    %v127 = vld [vmem:[%s3 + $0x38] sm:$0xf]
    %v128 = vld [vmem:[%s3 + $0x3c] sm:$0xf]
    %v129 = vld [vmem:[%s4] sm:$0x1]
    %v131 = vperm.slane %v129, 0
    %v133 = vpack.c.bf16 %v112, %v112
    %v150 = vunpack.c.l.b16 %v113
    %v151 = vunpack.c.l.b16 %v114
    %v152 = vunpack.c.l.b16 %v115
    %v153 = vunpack.c.l.b16 %v116
    %v154 = vunpack.c.l.b16 %v117
    %v155 = vunpack.c.l.b16 %v118
    %v156 = vunpack.c.l.b16 %v119
    %v157 = vunpack.c.l.b16 %v120
    %v158 = vunpack.c.l.b16 %v121
    %v159 = vunpack.c.l.b16 %v122
    %v160 = vunpack.c.l.b16 %v123
    %v161 = vunpack.c.l.b16 %v124
    %v162 = vunpack.c.l.b16 %v125
    %v163 = vunpack.c.l.b16 %v126
    %v164 = vunpack.c.l.b16 %v127
    %v165 = vunpack.c.l.b16 %v128
    %v166 = vpack.c.b16 %v151, %v150
    %v167 = vpack.c.b16 %v153, %v152
    %v168 = vpack.c.b16 %v155, %v154
    %v169 = vpack.c.b16 %v157, %v156
    %v170 = vpack.c.b16 %v159, %v158
    %v171 = vpack.c.b16 %v161, %v160
    %v172 = vpack.c.b16 %v163, %v162
    %v173 = vpack.c.b16 %v165, %v164
    %182 = vmatpush.bf16.msra.mxu0 %v173
    %183 = vmatpush.bf16.msra.mxu0 %v172
    %184 = vmatpush.bf16.msra.mxu0 %v171
    %185 = vmatpush.bf16.msra.mxu0 %v170
    %186 = vmatpush.bf16.msra.mxu0 %v169
    %187 = vmatpush.bf16.msra.mxu0 %v168
    %188 = vmatpush.bf16.msra.mxu0 %v167
    %189 = vmatpush.bf16.msra.mxu0 %v166
    %190 = vmatmul.bf16.gmra.mxu0 %v133
    %v191 = vpop.f32.mrf.mxu0
    %v192 = vadd.f32 %v131, %v191
    %v193 = vpop.f32.mrf.mxu0
    %194 = vdwg.mxu0
    %v195 = vmax.f32 %v192, 0.0
    %v196 = vadd.f32 %v112, %v195
    %v197 = vpack.c.bf16 %v196, %v196
    %198 = vmatpush.bf16.msra.mxu0 %v173
    %199 = vmatpush.bf16.msra.mxu0 %v172
    %200 = vmatpush.bf16.msra.mxu0 %v171
    %201 = vmatpush.bf16.msra.mxu0 %v170
    %202 = vmatpush.bf16.msra.mxu0 %v169
    %203 = vmatpush.bf16.msra.mxu0 %v168
    %204 = vmatpush.bf16.msra.mxu0 %v167
    %205 = vmatpush.bf16.msra.mxu0 %v166
    %206 = vmatmul.bf16.gmra.mxu0 %v197
    %v207 = vpop.f32.mrf.mxu0
    %v208 = vadd.f32 %v131, %v207
    %v209 = vpop.f32.mrf.mxu0
    %210 = vdwg.mxu0
    %v211 = vmax.f32 %v208, 0.0
    %v212 = vadd.f32 %v196, %v211
    %v213 = vpack.c.bf16 %v212, %v212
    %214 = vmatpush.bf16.msra.mxu0 %v173
    %215 = vmatpush.bf16.msra.mxu0 %v172
    %216 = vmatpush.bf16.msra.mxu0 %v171
    %217 = vmatpush.bf16.msra.mxu0 %v170
    %218 = vmatpush.bf16.msra.mxu0 %v169
    %219 = vmatpush.bf16.msra.mxu0 %v168
    %220 = vmatpush.bf16.msra.mxu0 %v167
    %221 = vmatpush.bf16.msra.mxu0 %v166
    %222 = vmatmul.bf16.gmra.mxu0 %v213
    %v223 = vpop.f32.mrf.mxu0
    %v224 = vadd.f32 %v131, %v223
    %v225 = vpop.f32.mrf.mxu0
    %226 = vdwg.mxu0
    %v227 = vmax.f32 %v224, 0.0
    %v228 = vadd.f32 %v212, %v227
    %v229 = vpack.c.bf16 %v228, %v228
    %v230 = vld [vmem:[%s5] sm:$0xf]
    %v231 = vld [vmem:[%s5 + $0x4] sm:$0xf]
    %v232 = vld [vmem:[%s5 + $0x8] sm:$0xf]
    %v233 = vld [vmem:[%s5 + $0xc] sm:$0xf]
    %v234 = vld [vmem:[%s5 + $0x10] sm:$0xf]
    %v235 = vld [vmem:[%s5 + $0x14] sm:$0xf]
    %v236 = vld [vmem:[%s5 + $0x18] sm:$0xf]
    %v237 = vld [vmem:[%s5 + $0x1c] sm:$0xf]
    %v238 = vld [vmem:[%s5 + $0x20] sm:$0xf]
    %v239 = vld [vmem:[%s5 + $0x24] sm:$0xf]
    %v240 = vld [vmem:[%s5 + $0x28] sm:$0xf]
    %v241 = vld [vmem:[%s5 + $0x2c] sm:$0xf]
    %v242 = vld [vmem:[%s5 + $0x30] sm:$0xf]
    %v243 = vld [vmem:[%s5 + $0x34] sm:$0xf]
    %v244 = vld [vmem:[%s5 + $0x38] sm:$0xf]
    %v245 = vld [vmem:[%s5 + $0x3c] sm:$0xf]
    %s246 = sld [smem:[#allocation2]]
    %v247 = vstv %s246
    %v264 = vunpack.c.l.b16 %v230
    %v265 = vunpack.c.l.b16 %v231
    %v266 = vunpack.c.l.b16 %v232
    %v267 = vunpack.c.l.b16 %v233
    %v268 = vunpack.c.l.b16 %v234
    %v269 = vunpack.c.l.b16 %v235
    %v270 = vunpack.c.l.b16 %v236
    %v271 = vunpack.c.l.b16 %v237
    %v272 = vunpack.c.l.b16 %v238
    %v273 = vunpack.c.l.b16 %v239
    %v274 = vunpack.c.l.b16 %v240
    %v275 = vunpack.c.l.b16 %v241
    %v276 = vunpack.c.l.b16 %v242
    %v277 = vunpack.c.l.b16 %v243
    %v278 = vunpack.c.l.b16 %v244
    %v279 = vunpack.c.l.b16 %v245
    %v280 = vpack.c.b16 %v265, %v264
    %v281 = vpack.c.b16 %v267, %v266
    %v282 = vpack.c.b16 %v269, %v268
    %v283 = vpack.c.b16 %v271, %v270
    %v284 = vpack.c.b16 %v273, %v272
    %v285 = vpack.c.b16 %v275, %v274
    %v286 = vpack.c.b16 %v277, %v276
    %v287 = vpack.c.b16 %v279, %v278
    %296 = vmatpush.bf16.msra.mxu0 %v287
    %297 = vmatpush.bf16.msra.mxu0 %v286
    %298 = vmatpush.bf16.msra.mxu0 %v285
    %299 = vmatpush.bf16.msra.mxu0 %v284
    %300 = vmatpush.bf16.msra.mxu0 %v283
    %301 = vmatpush.bf16.msra.mxu0 %v282
    %302 = vmatpush.bf16.msra.mxu0 %v281
    %303 = vmatpush.bf16.msra.mxu0 %v280
    %304 = vmatmul.bf16.gmra.mxu0 %v229
    %v305 = vpop.f32.mrf.mxu0
    %v306 = vadd.f32 %v247, %v305
    %v307 = vpop.f32.mrf.mxu0
    %308 = vdwg.mxu0
    %vm309 = vcmask 31744
    %310 = vst.msk [vmem:[%s7] sm:$0xff] %vm309, %v306
    // Predicated region
    $region38: #{tpu_custom_call.1} parent=1 // pred_check
      _
    $region39: #{tpu_custom_call.1} parent=1 // pred_check_branch
      %312 = sbr.rel (0) target = $region41
    $region40: #{tpu_custom_call.1} parent=1 // pred_region
      _
    $region41: #{tpu_custom_call.1} parent=1 // pred_fallthru
      _
    // Predicated region
    $region42: #{tpu_custom_call.1} parent=1 // pred_check
      _
    $region43: #{tpu_custom_call.1} parent=1 // pred_check_branch
      %314 = sbr.rel (0) target = $region45
    $region44: #{tpu_custom_call.1} parent=1 // pred_region
      _
    $region45: #{tpu_custom_call.1} parent=1 // pred_fallthru
      _
    %315 = vsyncpa [#allocation4], 1
    %316 = vsyncpa [#allocation6], 1

</llo_original>
